<compile_context>
chip_gen: v5e
topology: v5e:2x2
jax: 0.10.0
libtpu: 0.0.40
codegen_flags: <defaults>
</compile_context>

<pallas_src>
import jax
import jax.numpy as jnp
from jax import lax
from jax.experimental import pallas as pl
from jax.experimental.pallas import tpu as pltpu

_LANE = 128
_PAD_LOGIT = 120.0   # softplus(-120) == 0 exactly in f32; the (1-y)=0 factor kills softplus(+120)
_PAD_TARGET = 1


def _make_kernel(T, pos_weights, block_rows, acc_rows, valid_blocks, steps_per_core,
                 total_valid_rows, mask_last_block, has_ghost_blocks):
    """Builds the kernel body.

    refs layout: T prediction blocks, T target blocks, 1 output block, T accumulator scratch.
    """
    fold = block_rows // acc_rows

    def kernel(*refs):
        pred_refs = refs[:T]
        tgt_refs = refs[T:2 * T]
        out_ref = refs[2 * T]                    # (1, T, 128) per-core partial sums
        acc_refs = refs[2 * T + 1:]              # T x (acc_rows, 128) f32 scratch

        c = pl.program_id(0)                     # row-split ("parallel") axis
        i = pl.program_id(1)                     # reduction ("arbitrary") axis
        gb = c * steps_per_core + i              # global row-block index

        @pl.when(i == 0)
        def _init():
            for t in range(T):
                acc_refs[t][...] = jnp.zeros_like(acc_refs[t])

        def accumulate(masked):
            if masked:
                row = lax.broadcasted_iota(jnp.int32, (block_rows, _LANE), 0)
                row_valid = (gb * block_rows + row) < total_valid_rows
            for t in range(T):
                x = pred_refs[t][...].astype(jnp.float32)
                y = tgt_refs[t][...].astype(jnp.float32)
                # Numerically-stable softplus pair sharing one exp/log1p evaluation:
                #   softplus(-x) = relu(-x) + log1p(exp(-|x|))
                #   softplus( x) = relu( x) + log1p(exp(-|x|))   (no x + (-x) cancellation)
                log_term = jnp.log1p(jnp.exp(-jnp.abs(x)))
                sp_neg = jnp.maximum(-x, 0.0) + log_term
                sp_pos = jnp.maximum(x, 0.0) + log_term
                # BCEWithLogitsLoss(pos_weight=pw) per-element contribution, pw folded in.
                contrib = (pos_weights[t] * y) * sp_neg + (1.0 - y) * sp_pos
                if masked:
                    contrib = jnp.where(row_valid, contrib, 0.0)
                if fold > 1:
                    # Fold (block_rows,128) -> (acc_rows,128) with pure vreg adds; defer the
                    # sublane (XLU) reduce to the finalize step.
                    contrib = contrib.reshape(fold, acc_rows, _LANE).sum(axis=0)
                acc_refs[t][...] += contrib

        if mask_last_block:
            @pl.when(gb < valid_blocks - 1)
            def _interior():
                accumulate(masked=False)

            @pl.when(gb == valid_blocks - 1)
            def _boundary():
                accumulate(masked=True)
        elif has_ghost_blocks:
            @pl.when(gb < valid_blocks)
            def _guarded():
                accumulate(masked=False)
        else:
            accumulate(masked=False)

        @pl.when(i == steps_per_core - 1)
        def _finalize():
            rows_out = [jnp.sum(acc_refs[t][...], axis=0, keepdims=True) for t in range(T)]
            out_ref[...] = jnp.concatenate(rows_out, axis=0)[None]   # (1, T, 128)

    return kernel


def _multitask_bce_partial_sums(pred_rows, tgt_rows, pos_weights,
                                max_block_rows=1024, num_row_splits=2):
    """Per-core, per-task partial sums of the pos-weighted BCE contributions.

    pred_rows / tgt_rows: lists of T lane-dense (R, 128) arrays (f32 / bf16 / int8 ...);
    pos_weights: list of T python floats (fixed at construction, like the nn.Module).
    Returns a (num_cores, T, 128) f32 array of partial sums.
    """
    T = len(pred_rows)
    R = pred_rows[0].shape[0]

    if R <= max_block_rows:
        block_rows = R                     # full extent -> legal block for any input dtype
    else:
        assert max_block_rows % 32 == 0, (
            "max_block_rows must be a multiple of 32 (int8 sublane tile) for interior blocks")
        block_rows = max_block_rows

    valid_blocks = -(-R // block_rows)
    nc = max(1, min(num_row_splits, valid_blocks))
    steps_per_core = -(-valid_blocks // nc)
    mask_last_block = (R % block_rows) != 0
    has_ghost = nc * steps_per_core > valid_blocks
    acc_rows = 8 if block_rows % 8 == 0 else block_rows

    kernel = _make_kernel(T, pos_weights, block_rows, acc_rows, valid_blocks,
                          steps_per_core, R, mask_last_block, has_ghost)

    def row_block_map(c, i):
        # Clamp so ghost steps (when valid_blocks does not split evenly across cores) never
        # address past the array; the kernel skips their contribution.
        return (jnp.minimum(c * steps_per_core + i, valid_blocks - 1), 0)

    big_spec = pl.BlockSpec((block_rows, _LANE), row_block_map)
    out_spec = pl.BlockSpec((1, T, _LANE), lambda c, i: (c, 0, 0))

    elems = T * R * _LANE
    bytes_accessed = (sum(int(a.size) * a.dtype.itemsize for a in (*pred_rows, *tgt_rows))
                      + nc * T * _LANE * 4)

    grid_spec = pltpu.PrefetchScalarGridSpec(
        num_scalar_prefetch=0,
        grid=(nc, steps_per_core),
        in_specs=[big_spec] * (2 * T),
        out_specs=out_spec,
        scratch_shapes=[pltpu.VMEM((acc_rows, _LANE), jnp.float32) for _ in range(T)],
    )

    return pl.pallas_call(
        kernel,
        out_shape=jax.ShapeDtypeStruct((nc, T, _LANE), jnp.float32),
        grid_spec=grid_spec,
        compiler_params=pltpu.CompilerParams(
            dimension_semantics=("parallel", "arbitrary")),
        cost_estimate=pl.CostEstimate(flops=12 * elems, transcendentals=2 * elems,
                                      bytes_accessed=int(bytes_accessed)),
    )(*pred_rows, *tgt_rows)


def multitask_loss(predictions, targets, task_weights, class_weights,
                   max_block_rows=1024, num_row_splits=2):
    """Mirror of MultiTaskLoss.forward (per-task BCEWithLogitsLoss + weighted total).

    predictions: dict task -> (B, 1) or (B,) logits (f32 or bf16)
    targets:     dict task -> (B,) labels (f32 / bf16 / int8 / bool)
    task_weights: dict task -> float
    class_weights: dict task -> length-2 array; pos_weight = class_weights[task][1]
    Returns {'loss_<task>': scalar, ..., 'loss_total': scalar}
    """
    task_names = [t for t in task_weights if t in predictions and t in targets]
    batch = predictions[task_names[0]].shape[0]

    rows = -(-batch // _LANE)
    padded = rows * _LANE

    # Padded tail is (logit=+120, target=1) => exactly-zero contribution; no in-kernel lane
    # mask.  NOTE: when batch % 128 != 0 this jnp.pad re-materializes the inputs in HBM —
    # prefer lane-aligned batches upstream on bandwidth-bound chips.
    def to_rows(a, pad_value):
        a = a.reshape(-1)                  # squeeze(-1): (B,1) or (B,) -> (B,)
        if padded != batch:
            a = jnp.pad(a, (0, padded - batch), constant_values=pad_value)
        return a.reshape(rows, _LANE)      # free bitcast when no pad was needed

    pred_rows, tgt_rows, pos_weights = [], [], []
    for t in task_names:
        pred_rows.append(to_rows(predictions[t], _PAD_LOGIT))
        y = targets[t]
        if y.dtype == jnp.bool_:
            y = y.astype(jnp.int8)         # keep targets narrow; the kernel upcasts to f32
        tgt_rows.append(to_rows(y, _PAD_TARGET))
        pos_weights.append(float(class_weights[t][1]) if t in class_weights else 1.0)

    partials = _multitask_bce_partial_sums(pred_rows, tgt_rows, pos_weights,
                                           max_block_rows=max_block_rows,
                                           num_row_splits=num_row_splits)

    # Tiny JAX epilogue: combine per-core partial sums, apply the mean and task weights.
    per_task = partials.sum(axis=(0, 2)) * (1.0 / float(batch))          # (T,)
    tw = jnp.array([float(task_weights[t]) for t in task_names], jnp.float32)
    losses = {f'loss_{t}': per_task[i] for i, t in enumerate(task_names)}
    losses['loss_total'] = jnp.sum(tw * per_task)
    return losses


def _reference(predictions, targets, task_weights, class_weights):
    """Pure-JAX reference of the BCEWithLogitsLoss-based multi-task loss."""
    losses = {}
    total = 0.0
    for t, w in task_weights.items():
        if t not in predictions or t not in targets:
            continue
        x = predictions[t].reshape(-1).astype(jnp.float32)
        y = targets[t].reshape(-1).astype(jnp.float32)
        pw = float(class_weights[t][1]) if t in class_weights else 1.0
        log_term = jnp.log1p(jnp.exp(-jnp.abs(x)))
        sp_neg = jnp.maximum(-x, 0.0) + log_term
        sp_pos = jnp.maximum(x, 0.0) + log_term
        l = jnp.mean(pw * y * sp_neg + (1.0 - y) * sp_pos)
        losses[f'loss_{t}'] = l
        total = total + w * l
    losses['loss_total'] = total
    return losses


def _run_case(key, batch, task_weights, class_weights, pred_dtype, tgt_dtype,
              max_block_rows, num_row_splits):
    predictions, targets = {}, {}
    for t in task_weights:
        k1, k2, key = jax.random.split(key, 3)
        predictions[t] = jax.random.normal(k1, (batch, 1), dtype=jnp.float32).astype(pred_dtype)
        targets[t] = (jax.random.uniform(k2, (batch,)) > 0.5).astype(tgt_dtype)

    out = multitask_loss(predictions, targets, task_weights, class_weights,
                         max_block_rows=max_block_rows, num_row_splits=num_row_splits)
    out = jax.tree_util.tree_map(jax.block_until_ready, out)
    ref = _reference(predictions, targets, task_weights, class_weights)
    for k in ref:
        assert jnp.allclose(out[k], ref[k], atol=1e-5, rtol=1e-4), (k, out[k], ref[k])
    return key


if __name__ == "__main__":
    key = jax.random.PRNGKey(0)
    task_weights = {"horizon_1d": 1.0, "horizon_5d": 0.5, "horizon_20d": 0.25}
    # class_weights[task] = (neg_weight, pos_weight); missing task -> plain BCE.
    class_weights = {
        "horizon_1d": jnp.array([1.0, 2.0], dtype=jnp.float32),
        "horizon_5d": jnp.array([1.0, 3.5], dtype=jnp.float32),
        # "horizon_20d" intentionally absent -> pos_weight = 1.0
    }

    # Case 1: tiny batch (single lane-padded row), f32 inputs, single grid step.
    key = _run_case(key, batch=8, task_weights=task_weights, class_weights=class_weights,
                    pred_dtype=jnp.float32, tgt_dtype=jnp.float32,
                    max_block_rows=1024, num_row_splits=2)
    # Case 2: bf16 logits (narrow-dtype fast path), ragged batch, single full-extent block.
    key = _run_case(key, batch=2000, task_weights=task_weights, class_weights=class_weights,
                    pred_dtype=jnp.bfloat16, tgt_dtype=jnp.float32,
                    max_block_rows=1024, num_row_splits=2)
    # Case 3: bf16 logits + int8 targets, multi-step grid with a masked boundary block and a
    # ghost step on the second row-split (exercises init/finalize, masking, core split).
    key = _run_case(key, batch=8872, task_weights=task_weights, class_weights=class_weights,
                    pred_dtype=jnp.bfloat16, tgt_dtype=jnp.int8,
                    max_block_rows=32, num_row_splits=2)

    print("KERNEL_OK")
</pallas_src>

<mosaic_0001>
module attributes {stable_mosaic.version = 11 : i64} {
  func.func @kernel(%arg0: i32, %arg1: i32, %arg2: memref<1x128xf32, #tpu.memory_space<vmem>>, %arg3: memref<1x128xf32, #tpu.memory_space<vmem>>, %arg4: memref<1x128xf32, #tpu.memory_space<vmem>>, %arg5: memref<1x128xf32, #tpu.memory_space<vmem>>, %arg6: memref<1x128xf32, #tpu.memory_space<vmem>>, %arg7: memref<1x128xf32, #tpu.memory_space<vmem>>, %arg8: memref<1x3x128xf32, #tpu.memory_space<vmem>>, %arg9: memref<1x128xf32, #tpu.memory_space<vmem>>, %arg10: memref<1x128xf32, #tpu.memory_space<vmem>>, %arg11: memref<1x128xf32, #tpu.memory_space<vmem>>) attributes {dimension_semantics = [#tpu.dimension_semantics<parallel>, #tpu.dimension_semantics<arbitrary>], iteration_bounds = array<i64: 1, 1>, scalar_prefetch = 0 : i64, scratch_operands = 3 : i64, tpu.core_type = #tpu.core_type<tc>, window_params = [{transform_indices = @transform_0, window_bounds = array<i64: 1, 128>}, {transform_indices = @transform_1, window_bounds = array<i64: 1, 128>}, {transform_indices = @transform_2, window_bounds = array<i64: 1, 128>}, {transform_indices = @transform_3, window_bounds = array<i64: 1, 128>}, {transform_indices = @transform_4, window_bounds = array<i64: 1, 128>}, {transform_indices = @transform_5, window_bounds = array<i64: 1, 128>}, {transform_indices = @transform_6, window_bounds = array<i64: 1, 3, 128>}]} {
    %c0_i32 = arith.constant 0 : i32
    %0 = arith.cmpi eq, %arg1, %c0_i32 : i32
    %1 = arith.extui %0 : i1 to i32
    %c0_i32_0 = arith.constant 0 : i32
    %2 = arith.cmpi ne, %1, %c0_i32_0 : i32
    scf.if %2 {
      %cst_43 = arith.constant 0.000000e+00 : f32
      %81 = vector.broadcast %cst_43 : f32 to vector<1x128xf32>
      %c0_44 = arith.constant 0 : index
      %c0_45 = arith.constant 0 : index
      %82 = vector.load %arg9[%c0_44, %c0_45] : memref<1x128xf32, #tpu.memory_space<vmem>>, vector<1x128xf32>
      tpu.vector_store %arg9[%c0_44, %c0_45], %81 {strides = array<i32>} : memref<1x128xf32, #tpu.memory_space<vmem>>, vector<1x128xf32>,
      %cst_46 = arith.constant 0.000000e+00 : f32
      %83 = vector.broadcast %cst_46 : f32 to vector<1x128xf32>
      %c0_47 = arith.constant 0 : index
      %c0_48 = arith.constant 0 : index
      %84 = vector.load %arg10[%c0_47, %c0_48] : memref<1x128xf32, #tpu.memory_space<vmem>>, vector<1x128xf32>
      tpu.vector_store %arg10[%c0_47, %c0_48], %83 {strides = array<i32>} : memref<1x128xf32, #tpu.memory_space<vmem>>, vector<1x128xf32>,
      %cst_49 = arith.constant 0.000000e+00 : f32
      %85 = vector.broadcast %cst_49 : f32 to vector<1x128xf32>
      %c0_50 = arith.constant 0 : index
      %c0_51 = arith.constant 0 : index
      %86 = vector.load %arg11[%c0_50, %c0_51] : memref<1x128xf32, #tpu.memory_space<vmem>>, vector<1x128xf32>
      tpu.vector_store %arg11[%c0_50, %c0_51], %85 {strides = array<i32>} : memref<1x128xf32, #tpu.memory_space<vmem>>, vector<1x128xf32>,
    } else {
    }
    %c0 = arith.constant 0 : index
    %c0_1 = arith.constant 0 : index
    %3 = vector.load %arg2[%c0, %c0_1] : memref<1x128xf32, #tpu.memory_space<vmem>>, vector<1x128xf32>
    %c0_2 = arith.constant 0 : index
    %c0_3 = arith.constant 0 : index
    %4 = vector.load %arg5[%c0_2, %c0_3] : memref<1x128xf32, #tpu.memory_space<vmem>>, vector<1x128xf32>
    %5 = math.absf %3 : vector<1x128xf32>
    %cst = arith.constant 0.000000e+00 : f32
    %6 = vector.broadcast %cst : f32 to vector<1x128xf32>
    %7 = arith.subf %6, %5 : vector<1x128xf32>
    %8 = math.exp %7 : vector<1x128xf32>
    %9 = math.log1p %8 : vector<1x128xf32>
    %cst_4 = arith.constant 0.000000e+00 : f32
    %10 = vector.broadcast %cst_4 : f32 to vector<1x128xf32>
    %11 = arith.subf %10, %3 : vector<1x128xf32>
    %cst_5 = arith.constant 0.000000e+00 : f32
    %12 = vector.broadcast %cst_5 : f32 to vector<1x128xf32>
    %13 = arith.maximumf %11, %12 : vector<1x128xf32>
    %14 = arith.addf %13, %9 : vector<1x128xf32>
    %cst_6 = arith.constant 0.000000e+00 : f32
    %15 = vector.broadcast %cst_6 : f32 to vector<1x128xf32>
    %16 = arith.maximumf %3, %15 : vector<1x128xf32>
    %17 = arith.addf %16, %9 : vector<1x128xf32>
    %cst_7 = arith.constant 2.000000e+00 : f32
    %18 = vector.broadcast %cst_7 : f32 to vector<1x128xf32>
    %19 = arith.mulf %18, %4 : vector<1x128xf32>
    %20 = arith.mulf %19, %14 : vector<1x128xf32>
    %cst_8 = arith.constant 1.000000e+00 : f32
    %21 = vector.broadcast %cst_8 : f32 to vector<1x128xf32>
    %22 = arith.subf %21, %4 : vector<1x128xf32>
    %23 = arith.mulf %22, %17 : vector<1x128xf32>
    %24 = arith.addf %20, %23 : vector<1x128xf32>
    %c0_9 = arith.constant 0 : index
    %c0_10 = arith.constant 0 : index
    %25 = vector.load %arg9[%c0_9, %c0_10] : memref<1x128xf32, #tpu.memory_space<vmem>>, vector<1x128xf32>
    %26 = arith.addf %25, %24 : vector<1x128xf32>
    %c0_11 = arith.constant 0 : index
    %c0_12 = arith.constant 0 : index
    %27 = vector.load %arg9[%c0_11, %c0_12] : memref<1x128xf32, #tpu.memory_space<vmem>>, vector<1x128xf32>
    tpu.vector_store %arg9[%c0_11, %c0_12], %26 {strides = array<i32>} : memref<1x128xf32, #tpu.memory_space<vmem>>, vector<1x128xf32>,
    %c0_13 = arith.constant 0 : index
    %c0_14 = arith.constant 0 : index
    %28 = vector.load %arg3[%c0_13, %c0_14] : memref<1x128xf32, #tpu.memory_space<vmem>>, vector<1x128xf32>
    %c0_15 = arith.constant 0 : index
    %c0_16 = arith.constant 0 : index
    %29 = vector.load %arg6[%c0_15, %c0_16] : memref<1x128xf32, #tpu.memory_space<vmem>>, vector<1x128xf32>
    %30 = math.absf %28 : vector<1x128xf32>
    %cst_17 = arith.constant 0.000000e+00 : f32
    %31 = vector.broadcast %cst_17 : f32 to vector<1x128xf32>
    %32 = arith.subf %31, %30 : vector<1x128xf32>
    %33 = math.exp %32 : vector<1x128xf32>
    %34 = math.log1p %33 : vector<1x128xf32>
    %cst_18 = arith.constant 0.000000e+00 : f32
    %35 = vector.broadcast %cst_18 : f32 to vector<1x128xf32>
    %36 = arith.subf %35, %28 : vector<1x128xf32>
    %cst_19 = arith.constant 0.000000e+00 : f32
    %37 = vector.broadcast %cst_19 : f32 to vector<1x128xf32>
    %38 = arith.maximumf %36, %37 : vector<1x128xf32>
    %39 = arith.addf %38, %34 : vector<1x128xf32>
    %cst_20 = arith.constant 0.000000e+00 : f32
    %40 = vector.broadcast %cst_20 : f32 to vector<1x128xf32>
    %41 = arith.maximumf %28, %40 : vector<1x128xf32>
    %42 = arith.addf %41, %34 : vector<1x128xf32>
    %cst_21 = arith.constant 3.500000e+00 : f32
    %43 = vector.broadcast %cst_21 : f32 to vector<1x128xf32>
    %44 = arith.mulf %43, %29 : vector<1x128xf32>
    %45 = arith.mulf %44, %39 : vector<1x128xf32>
    %cst_22 = arith.constant 1.000000e+00 : f32
    %46 = vector.broadcast %cst_22 : f32 to vector<1x128xf32>
    %47 = arith.subf %46, %29 : vector<1x128xf32>
    %48 = arith.mulf %47, %42 : vector<1x128xf32>
    %49 = arith.addf %45, %48 : vector<1x128xf32>
    %c0_23 = arith.constant 0 : index
    %c0_24 = arith.constant 0 : index
    %50 = vector.load %arg10[%c0_23, %c0_24] : memref<1x128xf32, #tpu.memory_space<vmem>>, vector<1x128xf32>
    %51 = arith.addf %50, %49 : vector<1x128xf32>
    %c0_25 = arith.constant 0 : index
    %c0_26 = arith.constant 0 : index
    %52 = vector.load %arg10[%c0_25, %c0_26] : memref<1x128xf32, #tpu.memory_space<vmem>>, vector<1x128xf32>
    tpu.vector_store %arg10[%c0_25, %c0_26], %51 {strides = array<i32>} : memref<1x128xf32, #tpu.memory_space<vmem>>, vector<1x128xf32>,
    %c0_27 = arith.constant 0 : index
    %c0_28 = arith.constant 0 : index
    %53 = vector.load %arg4[%c0_27, %c0_28] : memref<1x128xf32, #tpu.memory_space<vmem>>, vector<1x128xf32>
    %c0_29 = arith.constant 0 : index
    %c0_30 = arith.constant 0 : index
    %54 = vector.load %arg7[%c0_29, %c0_30] : memref<1x128xf32, #tpu.memory_space<vmem>>, vector<1x128xf32>
    %55 = math.absf %53 : vector<1x128xf32>
    %cst_31 = arith.constant 0.000000e+00 : f32
    %56 = vector.broadcast %cst_31 : f32 to vector<1x128xf32>
    %57 = arith.subf %56, %55 : vector<1x128xf32>
    %58 = math.exp %57 : vector<1x128xf32>
    %59 = math.log1p %58 : vector<1x128xf32>
    %cst_32 = arith.constant 0.000000e+00 : f32
    %60 = vector.broadcast %cst_32 : f32 to vector<1x128xf32>
    %61 = arith.subf %60, %53 : vector<1x128xf32>
    %cst_33 = arith.constant 0.000000e+00 : f32
    %62 = vector.broadcast %cst_33 : f32 to vector<1x128xf32>
    %63 = arith.maximumf %61, %62 : vector<1x128xf32>
    %64 = arith.addf %63, %59 : vector<1x128xf32>
    %cst_34 = arith.constant 0.000000e+00 : f32
    %65 = vector.broadcast %cst_34 : f32 to vector<1x128xf32>
    %66 = arith.maximumf %53, %65 : vector<1x128xf32>
    %67 = arith.addf %66, %59 : vector<1x128xf32>
    %cst_35 = arith.constant 1.000000e+00 : f32
    %68 = vector.broadcast %cst_35 : f32 to vector<1x128xf32>
    %69 = arith.mulf %68, %54 : vector<1x128xf32>
    %70 = arith.mulf %69, %64 : vector<1x128xf32>
    %cst_36 = arith.constant 1.000000e+00 : f32
    %71 = vector.broadcast %cst_36 : f32 to vector<1x128xf32>
    %72 = arith.subf %71, %54 : vector<1x128xf32>
    %73 = arith.mulf %72, %67 : vector<1x128xf32>
    %74 = arith.addf %70, %73 : vector<1x128xf32>
    %c0_37 = arith.constant 0 : index
    %c0_38 = arith.constant 0 : index
    %75 = vector.load %arg11[%c0_37, %c0_38] : memref<1x128xf32, #tpu.memory_space<vmem>>, vector<1x128xf32>
    %76 = arith.addf %75, %74 : vector<1x128xf32>
    %c0_39 = arith.constant 0 : index
    %c0_40 = arith.constant 0 : index
    %77 = vector.load %arg11[%c0_39, %c0_40] : memref<1x128xf32, #tpu.memory_space<vmem>>, vector<1x128xf32>
    tpu.vector_store %arg11[%c0_39, %c0_40], %76 {strides = array<i32>} : memref<1x128xf32, #tpu.memory_space<vmem>>, vector<1x128xf32>,
    %c0_i32_41 = arith.constant 0 : i32
    %78 = arith.cmpi eq, %arg1, %c0_i32_41 : i32
    %79 = arith.extui %78 : i1 to i32
    %c0_i32_42 = arith.constant 0 : i32
    %80 = arith.cmpi ne, %79, %c0_i32_42 : i32
    scf.if %80 {
      %c0_43 = arith.constant 0 : index
      %c0_44 = arith.constant 0 : index
      %81 = vector.load %arg9[%c0_43, %c0_44] : memref<1x128xf32, #tpu.memory_space<vmem>>, vector<1x128xf32>
      %cst_45 = arith.constant dense<0.000000e+00> : vector<128xf32>
      %82 = vector.multi_reduction <add>, %81, %cst_45 [0] : vector<1x128xf32> to vector<128xf32>
      %83 = vector.shape_cast %82 : vector<128xf32> to vector<1x128xf32>
      %c0_46 = arith.constant 0 : index
      %c0_47 = arith.constant 0 : index
      %84 = vector.load %arg10[%c0_46, %c0_47] : memref<1x128xf32, #tpu.memory_space<vmem>>, vector<1x128xf32>
      %cst_48 = arith.constant dense<0.000000e+00> : vector<128xf32>
      %85 = vector.multi_reduction <add>, %84, %cst_48 [0] : vector<1x128xf32> to vector<128xf32>
      %86 = vector.shape_cast %85 : vector<128xf32> to vector<1x128xf32>
      %c0_49 = arith.constant 0 : index
      %c0_50 = arith.constant 0 : index
      %87 = vector.load %arg11[%c0_49, %c0_50] : memref<1x128xf32, #tpu.memory_space<vmem>>, vector<1x128xf32>
      %cst_51 = arith.constant dense<0.000000e+00> : vector<128xf32>
      %88 = vector.multi_reduction <add>, %87, %cst_51 [0] : vector<1x128xf32> to vector<128xf32>
      %89 = vector.shape_cast %88 : vector<128xf32> to vector<1x128xf32>
      %90 = tpu.concatenate %83, %86, %89 in 0 : vector<1x128xf32>, vector<1x128xf32>, vector<1x128xf32> -> vector<3x128xf32>
      %91 = vector.shape_cast %90 : vector<3x128xf32> to vector<1x3x128xf32>
      %c0_52 = arith.constant 0 : index
      %c0_53 = arith.constant 0 : index
      %c0_54 = arith.constant 0 : index
      %92 = vector.load %arg8[%c0_52, %c0_53, %c0_54] : memref<1x3x128xf32, #tpu.memory_space<vmem>>, vector<1x3x128xf32>
      tpu.vector_store %arg8[%c0_52, %c0_53, %c0_54], %91 {strides = array<i32>} : memref<1x3x128xf32, #tpu.memory_space<vmem>>, vector<1x3x128xf32>,
    } else {
    }
    return
  }
  func.func @transform_0(%arg0: i32, %arg1: i32) -> (i32, i32) {
    %c1_i32 = arith.constant 1 : i32
    %0 = arith.muli %arg0, %c1_i32 : i32
    %1 = arith.addi %0, %arg1 : i32
    %c0_i32 = arith.constant 0 : i32
    %2 = arith.minsi %1, %c0_i32 : i32
    %c0_i32_0 = arith.constant 0 : i32
    %c0_i32_1 = arith.constant 0 : i32
    return %2, %c0_i32_0 : i32, i32
  }
  func.func @transform_1(%arg0: i32, %arg1: i32) -> (i32, i32) {
    %c1_i32 = arith.constant 1 : i32
    %0 = arith.muli %arg0, %c1_i32 : i32
    %1 = arith.addi %0, %arg1 : i32
    %c0_i32 = arith.constant 0 : i32
    %2 = arith.minsi %1, %c0_i32 : i32
    %c0_i32_0 = arith.constant 0 : i32
    %c0_i32_1 = arith.constant 0 : i32
    return %2, %c0_i32_0 : i32, i32
  }
  func.func @transform_2(%arg0: i32, %arg1: i32) -> (i32, i32) {
    %c1_i32 = arith.constant 1 : i32
    %0 = arith.muli %arg0, %c1_i32 : i32
    %1 = arith.addi %0, %arg1 : i32
    %c0_i32 = arith.constant 0 : i32
    %2 = arith.minsi %1, %c0_i32 : i32
    %c0_i32_0 = arith.constant 0 : i32
    %c0_i32_1 = arith.constant 0 : i32
    return %2, %c0_i32_0 : i32, i32
  }
  func.func @transform_3(%arg0: i32, %arg1: i32) -> (i32, i32) {
    %c1_i32 = arith.constant 1 : i32
    %0 = arith.muli %arg0, %c1_i32 : i32
    %1 = arith.addi %0, %arg1 : i32
    %c0_i32 = arith.constant 0 : i32
    %2 = arith.minsi %1, %c0_i32 : i32
    %c0_i32_0 = arith.constant 0 : i32
    %c0_i32_1 = arith.constant 0 : i32
    return %2, %c0_i32_0 : i32, i32
  }
  func.func @transform_4(%arg0: i32, %arg1: i32) -> (i32, i32) {
    %c1_i32 = arith.constant 1 : i32
    %0 = arith.muli %arg0, %c1_i32 : i32
    %1 = arith.addi %0, %arg1 : i32
    %c0_i32 = arith.constant 0 : i32
    %2 = arith.minsi %1, %c0_i32 : i32
    %c0_i32_0 = arith.constant 0 : i32
    %c0_i32_1 = arith.constant 0 : i32
    return %2, %c0_i32_0 : i32, i32
  }
  func.func @transform_5(%arg0: i32, %arg1: i32) -> (i32, i32) {
    %c1_i32 = arith.constant 1 : i32
    %0 = arith.muli %arg0, %c1_i32 : i32
    %1 = arith.addi %0, %arg1 : i32
    %c0_i32 = arith.constant 0 : i32
    %2 = arith.minsi %1, %c0_i32 : i32
    %c0_i32_0 = arith.constant 0 : i32
    %c0_i32_1 = arith.constant 0 : i32
    return %2, %c0_i32_0 : i32, i32
  }
  func.func @transform_6(%arg0: i32, %arg1: i32) -> (i32, i32, i32) {
    %c0_i32 = arith.constant 0 : i32
    %c0_i32_0 = arith.constant 0 : i32
    %c0_i32_1 = arith.constant 0 : i32
    return %arg0, %c0_i32, %c0_i32_0 : i32, i32, i32
  }
}

</mosaic_0001>

<llo_original>
// kernel: tpu_custom_call.1
$region0: #{tpu_custom_call.1}
  #allocation0 [shape = 'u32[]', space=smem, size = 0x4, offset = 0x4, fixed_abs, tag = 'smem constant byte address 0x4 - core index']
  #allocation1 [shape = 'u32[72,128]{1,0:T(1,128)}', space=vmem, size = 0x9000, scoped, tag = 'internal scratch']
  #allocation2 [shape = 'f32[1,128]{1,0:T(1,128)}', space=vmem, size = 0x200, scoped, tag = 'scratch operand']
  #allocation3 [shape = 'f32[1,128]{1,0:T(1,128)}', space=vmem, size = 0x200, scoped, tag = 'scratch operand']
  #allocation4 [shape = 'f32[1,128]{1,0:T(1,128)}', space=vmem, size = 0x200, scoped, tag = 'scratch operand']
  %s0 = inlined_call_operand.hbm [shape: f32[1,128], index: 0, kind: input, shape index: {}]
  %s1 = inlined_call_operand.hbm [shape: f32[1,128], index: 1, kind: input, shape index: {}]
  %s2 = inlined_call_operand.vmem [shape: f32[1,128], index: 2, kind: input, shape index: {}]
  %s3 = inlined_call_operand.vmem [shape: f32[1,128], index: 3, kind: input, shape index: {}]
  %s4 = inlined_call_operand.vmem [shape: f32[1,128], index: 4, kind: input, shape index: {}]
  %s5 = inlined_call_operand.vmem [shape: f32[1,128], index: 5, kind: input, shape index: {}]
  %s6 = inlined_call_operand.vmem [shape: f32[1,3,128], index: 6, kind: output, shape index: {}]
  %s7 = sld [smem:[#allocation0]]
  $region50: #{tpu_custom_call.1} parent=0
    _
  %s9 = ssub.s32 1, %s7
  %s10 = scalar_select 0, %s9, %s7
  $region1: #{tpu_custom_call.1} parent=0
    #allocation5 [shape = 'u8[512]{0}', space=vmem, size = 0x400, scoped, tag = 'input window, operand 0, single buffered']
    #allocation6 [shape = 's32[1]{0}', space=sflag, size = 0x4, scoped, tag = 'scoped memory for tpu_custom_call.1']
    #allocation7 [shape = 'u8[512]{0}', space=vmem, size = 0x400, scoped, tag = 'input window, operand 1, single buffered']
    #allocation8 [shape = 's32[1]{0}', space=sflag, size = 0x4, scoped, tag = 'scoped memory for tpu_custom_call.1']
    %11 = vsyncpa [#allocation6], 0
    %12 = vsyncpa [#allocation8], 0
    // Predicated region
    $region2: #{tpu_custom_call.1} parent=1 // pred_check
      _
    $region3: #{tpu_custom_call.1} parent=1 // pred_check_branch
      %14 = sbr.rel (0) target = $region5
    $region4: #{tpu_custom_call.1} parent=1 // pred_region
      %s15 = sadd.s32 0, 0
      %p16 = scmp.lt.s32.totalorder %s15, 0
      %s17 = scalar_select %p16, %s15, 0
      %19 = vsyncadd [#allocation6], 0
      %s20 = scalar_lea.hbm %s0, %s17
      %s22 = sshll.u32 %s20, 4
      %s23 = int_to_ptr.hbm [resolvable:$true] %s22
      %s24 = sshll.u32 [#allocation5], 4
      %s25 = int_to_ptr.vmem [resolvable:$true] %s24
      %27 = dma.hbm_to_vmem [thread:$0]  %s23, 16, %s25, [#allocation6]
    $region5: #{tpu_custom_call.1} parent=1 // pred_fallthru
      _
    // Predicated region
    $region6: #{tpu_custom_call.1} parent=1 // pred_check
      _
    $region7: #{tpu_custom_call.1} parent=1 // pred_check_branch
      %29 = sbr.rel (0) target = $region9
    $region8: #{tpu_custom_call.1} parent=1 // pred_region
      %s30 = sadd.s32 0, 0
      %p31 = scmp.lt.s32.totalorder %s30, 0
      %s32 = scalar_select %p31, %s30, 0
      %34 = vsyncadd [#allocation8], 0
      %s35 = scalar_lea.hbm %s1, %s32
      %s37 = sshll.u32 %s35, 4
      %s38 = int_to_ptr.hbm [resolvable:$true] %s37
      %s39 = sshll.u32 [#allocation7], 4
      %s40 = int_to_ptr.vmem [resolvable:$true] %s39
      %42 = dma.hbm_to_vmem [thread:$0]  %s38, 16, %s40, [#allocation8]
    $region9: #{tpu_custom_call.1} parent=1 // pred_fallthru
      _
    // Predicated region
    $region10: #{tpu_custom_call.1} parent=1 // pred_check
      _
    $region11: #{tpu_custom_call.1} parent=1 // pred_check_branch
      %44 = sbr.rel (0) target = $region13
    $region12: #{tpu_custom_call.1} parent=1 // pred_region
      %s45 = sadd.s32 0, 0
      %p46 = scmp.lt.s32.totalorder %s45, 0
      %s47 = scalar_select %p46, %s45, 0
      %p48 = scmp.lt.s32.totalorder %s47, 0
      %s49 = scalar_select %p48, %s47, 0
      %s50 = scalar_lea.vmem %s2, %s49
      %s51 = sadd.s32 0, 0
      %p52 = scmp.lt.s32.totalorder %s51, 0
      %s53 = scalar_select %p52, %s51, 0
    $region13: #{tpu_custom_call.1} parent=1 // pred_fallthru
      _
    // Predicated region
    $region14: #{tpu_custom_call.1} parent=1 // pred_check
      _
    $region15: #{tpu_custom_call.1} parent=1 // pred_check_branch
      %55 = sbr.rel (0) target = $region17
    $region16: #{tpu_custom_call.1} parent=1 // pred_region
      %s56 = sadd.s32 0, 0
      %p57 = scmp.lt.s32.totalorder %s56, 0
      %s58 = scalar_select %p57, %s56, 0
      %p59 = scmp.lt.s32.totalorder %s58, 0
      %s60 = scalar_select %p59, %s58, 0
      %s61 = scalar_lea.vmem %s3, %s60
      %s62 = sadd.s32 0, 0
      %p63 = scmp.lt.s32.totalorder %s62, 0
      %s64 = scalar_select %p63, %s62, 0
    $region17: #{tpu_custom_call.1} parent=1 // pred_fallthru
      _
    // Predicated region
    $region18: #{tpu_custom_call.1} parent=1 // pred_check
      _
    $region19: #{tpu_custom_call.1} parent=1 // pred_check_branch
      %66 = sbr.rel (0) target = $region21
    $region20: #{tpu_custom_call.1} parent=1 // pred_region
      %s67 = sadd.s32 0, 0
      %p68 = scmp.lt.s32.totalorder %s67, 0
      %s69 = scalar_select %p68, %s67, 0
      %p70 = scmp.lt.s32.totalorder %s69, 0
      %s71 = scalar_select %p70, %s69, 0
      %s72 = scalar_lea.vmem %s4, %s71
      %s73 = sadd.s32 0, 0
      %p74 = scmp.lt.s32.totalorder %s73, 0
      %s75 = scalar_select %p74, %s73, 0
    $region21: #{tpu_custom_call.1} parent=1 // pred_fallthru
      _
    // Predicated region
    $region22: #{tpu_custom_call.1} parent=1 // pred_check
      _
    $region23: #{tpu_custom_call.1} parent=1 // pred_check_branch
      %77 = sbr.rel (0) target = $region25
    $region24: #{tpu_custom_call.1} parent=1 // pred_region
      %s78 = sadd.s32 0, 0
      %p79 = scmp.lt.s32.totalorder %s78, 0
      %s80 = scalar_select %p79, %s78, 0
      %p81 = scmp.lt.s32.totalorder %s80, 0
      %s82 = scalar_select %p81, %s80, 0
      %s83 = scalar_lea.vmem %s5, %s82
      %s84 = sadd.s32 0, 0
      %p85 = scmp.lt.s32.totalorder %s84, 0
      %s86 = scalar_select %p85, %s84, 0
    $region25: #{tpu_custom_call.1} parent=1 // pred_fallthru
      _
    // Predicated region
    $region26: #{tpu_custom_call.1} parent=1 // pred_check
      _
    $region27: #{tpu_custom_call.1} parent=1 // pred_check_branch
      %88 = sbr.rel (0) target = $region29
    $region28: #{tpu_custom_call.1} parent=1 // pred_region
      %90 = dma.done [#allocation6], 16
    $region29: #{tpu_custom_call.1} parent=1 // pred_fallthru
      _
    // Predicated region
    $region30: #{tpu_custom_call.1} parent=1 // pred_check
      _
    $region31: #{tpu_custom_call.1} parent=1 // pred_check_branch
      %92 = sbr.rel (0) target = $region33
    $region32: #{tpu_custom_call.1} parent=1 // pred_region
      %94 = dma.done [#allocation8], 16
    $region33: #{tpu_custom_call.1} parent=1 // pred_fallthru
      _
    %s95 = sadd.s32 0, 0
    %p96 = scmp.lt.s32.totalorder %s95, 0
    %s97 = scalar_select %p96, %s95, 0
    %p98 = scmp.lt.s32.totalorder %s97, 0
    %s99 = scalar_select %p98, %s97, 0
    %s100 = scalar_lea.vmem %s2, %s99
    %s101 = sadd.s32 0, 0
    %p102 = scmp.lt.s32.totalorder %s101, 0
    %s103 = scalar_select %p102, %s101, 0
    %p104 = scmp.lt.s32.totalorder %s103, 0
    %s105 = scalar_select %p104, %s103, 0
    %s106 = scalar_lea.vmem %s3, %s105
    %s107 = sadd.s32 0, 0
    %p108 = scmp.lt.s32.totalorder %s107, 0
    %s109 = scalar_select %p108, %s107, 0
    %p110 = scmp.lt.s32.totalorder %s109, 0
    %s111 = scalar_select %p110, %s109, 0
    %s112 = scalar_lea.vmem %s4, %s111
    %s113 = sadd.s32 0, 0
    %p114 = scmp.lt.s32.totalorder %s113, 0
    %s115 = scalar_select %p114, %s113, 0
    %p116 = scmp.lt.s32.totalorder %s115, 0
    %s117 = scalar_select %p116, %s115, 0
    %s118 = scalar_lea.vmem %s5, %s117
    %s119 = sadd.s32 0, 0
    %p120 = scmp.lt.s32.totalorder %s119, 0
    %s121 = scalar_select %p120, %s119, 0
    %s122 = sadd.s32 0, 0
    %p123 = scmp.lt.s32.totalorder %s122, 0
    %s124 = scalar_select %p123, %s122, 0
    %s125 = sadd.s32 0, 0
    %p126 = scmp.lt.s32.totalorder %s125, 0
    %s127 = scalar_select %p126, %s125, 0
    %p128 = scmp.lt.s32.totalorder %s127, 0
    %s129 = scalar_select %p128, %s127, 0
    %s130 = scalar_lea.vmem %s2, %s129
    %s131 = sadd.s32 0, 0
    %p132 = scmp.lt.s32.totalorder %s131, 0
    %s133 = scalar_select %p132, %s131, 0
    %s134 = sadd.s32 0, 0
    %p135 = scmp.lt.s32.totalorder %s134, 0
    %s136 = scalar_select %p135, %s134, 0
    %p137 = scmp.lt.s32.totalorder %s136, 0
    %s138 = scalar_select %p137, %s136, 0
    %s139 = scalar_lea.vmem %s3, %s138
    %s140 = sadd.s32 0, 0
    %p141 = scmp.lt.s32.totalorder %s140, 0
    %s142 = scalar_select %p141, %s140, 0
    %s143 = sadd.s32 0, 0
    %p144 = scmp.lt.s32.totalorder %s143, 0
    %s145 = scalar_select %p144, %s143, 0
    %p146 = scmp.lt.s32.totalorder %s145, 0
    %s147 = scalar_select %p146, %s145, 0
    %s148 = scalar_lea.vmem %s4, %s147
    %s149 = sadd.s32 0, 0
    %p150 = scmp.lt.s32.totalorder %s149, 0
    %s151 = scalar_select %p150, %s149, 0
    %s152 = sadd.s32 0, 0
    %p153 = scmp.lt.s32.totalorder %s152, 0
    %s154 = scalar_select %p153, %s152, 0
    %p155 = scmp.lt.s32.totalorder %s154, 0
    %s156 = scalar_select %p155, %s154, 0
    %s157 = scalar_lea.vmem %s5, %s156
    %s158 = sadd.s32 0, 0
    %p159 = scmp.lt.s32.totalorder %s158, 0
    %s160 = scalar_select %p159, %s158, 0
    %p161 = scmp.eq.s32.totalorder 0, 0
    // Predicated region
    $region34: #{tpu_custom_call.1} parent=1 // pred_check
      %p162 = pneg %p161
    $region35: #{tpu_custom_call.1} parent=1 // pred_check_branch
      %164 = sbr.rel (%p162) target = $region37
    $region36: #{tpu_custom_call.1} parent=1 // pred_region
      %165 = vst [vmem:[#allocation2] sm:$0x1] 0.0
      %166 = vst [vmem:[#allocation3] sm:$0x1] 0.0
      %167 = vst [vmem:[#allocation4] sm:$0x1] 0.0
    $region37: #{tpu_custom_call.1} parent=1 // pred_fallthru
      _
    %v168 = vld [vmem:[#allocation5] sm:$0x1]
    %v169 = vld [vmem:[%s139] sm:$0x1]
    %v170 = vand.u32 2147483647, %v168
    %v171 = vsub.f32 0.0, %v170
    %v172 = vmul.f32 %v171, 1.442695
    %v173 = vpow.pop %v172
    %v174 = vadd.f32 %v173, 1.0
    %v175 = vlog2.pop %v174
    %v176 = vmul.f32 %v175, 0.6931472
    %v177 = vmul.f32 -0.5, %v173
    %v178 = vadd.f32 %v177, 1.0
    %v179 = vmul.f32 %v178, %v173
    %v180 = vand.u32 2147483647, %v173
    %vm181 = vcmp.lt.f32.partialorder %v180, 0.0004427343
    %v182 = vsel %vm181, %v179, %v176
    %v183 = vsub.f32 0.0, %v168
    %v184 = vmax.f32 %v183, 0.0
    %v185 = vadd.f32 %v184, %v182
    %v186 = vmax.f32 %v168, 0.0
    %v187 = vadd.f32 %v186, %v182
    %v188 = vmul.f32 %v169, 2.0
    %v189 = vmul.f32 %v188, %v185
    %v190 = vsub.f32 1.0, %v169
    %v191 = vmul.f32 %v190, %v187
    %v192 = vadd.f32 %v189, %v191
    %v193 = vld [vmem:[#allocation2] sm:$0x1]
    %v194 = vadd.f32 %v193, %v192
    %195 = vst [vmem:[#allocation2] sm:$0x1] %v194
    %v196 = vld [vmem:[#allocation7] sm:$0x1]
    %v197 = vld [vmem:[%s148] sm:$0x1]
    %v198 = vand.u32 2147483647, %v196
    %v199 = vsub.f32 0.0, %v198
    %v200 = vmul.f32 %v199, 1.442695
    %v201 = vpow.pop %v200
    %v202 = vadd.f32 %v201, 1.0
    %v203 = vlog2.pop %v202
    %v204 = vmul.f32 %v203, 0.6931472
    %v205 = vmul.f32 -0.5, %v201
    %v206 = vadd.f32 %v205, 1.0
    %v207 = vmul.f32 %v206, %v201
    %v208 = vand.u32 2147483647, %v201
    %vm209 = vcmp.lt.f32.partialorder %v208, 0.0004427343
    %v210 = vsel %vm209, %v207, %v204
    %v211 = vsub.f32 0.0, %v196
    %v212 = vmax.f32 %v211, 0.0
    %v213 = vadd.f32 %v212, %v210
    %v214 = vmax.f32 %v196, 0.0
    %v215 = vadd.f32 %v214, %v210
    %v216 = vmul.f32 %v197, 3.5
    %v217 = vmul.f32 %v216, %v213
    %v218 = vsub.f32 1.0, %v197
    %v219 = vmul.f32 %v218, %v215
    %v220 = vadd.f32 %v217, %v219
    %v221 = vld [vmem:[#allocation3] sm:$0x1]
    %v222 = vadd.f32 %v221, %v220
    %223 = vst [vmem:[#allocation3] sm:$0x1] %v222
    %v224 = vld [vmem:[%s130] sm:$0x1]
    %v225 = vld [vmem:[%s157] sm:$0x1]
    %v226 = vand.u32 2147483647, %v224
    %v227 = vsub.f32 0.0, %v226
    %v228 = vmul.f32 %v227, 1.442695
    %v229 = vpow.pop %v228
    %v230 = vadd.f32 %v229, 1.0
    %v231 = vlog2.pop %v230
    %v232 = vmul.f32 %v231, 0.6931472
    %v233 = vmul.f32 -0.5, %v229
    %v234 = vadd.f32 %v233, 1.0
    %v235 = vmul.f32 %v234, %v229
    %v236 = vand.u32 2147483647, %v229
    %vm237 = vcmp.lt.f32.partialorder %v236, 0.0004427343
    %v238 = vsel %vm237, %v235, %v232
    %v239 = vsub.f32 0.0, %v224
    %v240 = vmax.f32 %v239, 0.0
    %v241 = vadd.f32 %v240, %v238
    %v242 = vmax.f32 %v224, 0.0
    %v243 = vadd.f32 %v242, %v238
    %v244 = vmul.f32 %v225, %v241
    %v245 = vsub.f32 1.0, %v225
    %v246 = vmul.f32 %v245, %v243
    %v247 = vadd.f32 %v244, %v246
    %v248 = vld [vmem:[#allocation4] sm:$0x1]
    %v249 = vadd.f32 %v248, %v247
    %250 = vst [vmem:[#allocation4] sm:$0x1] %v249
    // Predicated region
    $region38: #{tpu_custom_call.1} parent=1 // pred_check
      %p251 = pneg %p161
    $region39: #{tpu_custom_call.1} parent=1 // pred_check_branch
      %253 = sbr.rel (%p251) target = $region41
    $region40: #{tpu_custom_call.1} parent=1 // pred_region
      %v254 = vld [vmem:[#allocation2] sm:$0x1]
      %v255 = vadd.f32 %v254, 0.0
      %v256 = vld [vmem:[#allocation3] sm:$0x1]
      %v257 = vadd.f32 %v256, 0.0
      %v258 = vld [vmem:[#allocation4] sm:$0x1]
      %v259 = vadd.f32 %v258, 0.0
      %v261 = vperm.slane %v257, 0
      %v264 = vperm.slane %v259, 0
      %vm266 = vcmask 1040384
      %v267 = vsel %vm266, %v255, %v261
      %vm268 = vcmask 1041408
      %v269 = vsel %vm268, %v267, %v264
      %270 = vst [vmem:[%s6] sm:$0x7] %v269
    $region41: #{tpu_custom_call.1} parent=1 // pred_fallthru
      _
    // Predicated region
    $region42: #{tpu_custom_call.1} parent=1 // pred_check
      _
    $region43: #{tpu_custom_call.1} parent=1 // pred_check_branch
      %272 = sbr.rel (0) target = $region45
    $region44: #{tpu_custom_call.1} parent=1 // pred_region
      _
    $region45: #{tpu_custom_call.1} parent=1 // pred_fallthru
      _
    // Predicated region
    $region46: #{tpu_custom_call.1} parent=1 // pred_check
      _
    $region47: #{tpu_custom_call.1} parent=1 // pred_check_branch
      %274 = sbr.rel (0) target = $region49
    $region48: #{tpu_custom_call.1} parent=1 // pred_region
      _
    $region49: #{tpu_custom_call.1} parent=1 // pred_fallthru
      _
    %275 = vsyncpa [#allocation6], 1
    %276 = vsyncpa [#allocation8], 1

</llo_original>
